<compile_context>
chip_gen: v7x
topology: tpu7x:2x2x1
jax: 0.10.0
libtpu: 0.0.40
codegen_flags: <defaults>
</compile_context>

<pallas_src>
import jax
import jax.numpy as jnp
from jax.experimental import pallas as pl
from jax.experimental.pallas import tpu as pltpu


def _round_up(x, m):
    return (x + m - 1) // m * m


def _block_spec(shape, index_map, *, buffers=None):
    """BlockSpec helper; requests N-deep buffering when supported."""
    if buffers is not None and hasattr(pl, "Buffered"):
        try:
            return pl.BlockSpec(shape, index_map,
                                pipeline_mode=pl.Buffered(buffers))
        except TypeError:  # older jax without pipeline_mode kwarg
            pass
    return pl.BlockSpec(shape, index_map)


# ----------------------------------------------------------------------------
# Pallas kernel: single matmul (conv taps folded into K) + fused bias + ReLU
# ----------------------------------------------------------------------------
def _matmul_bias_relu_kernel(x_ref, w_ref, b_ref, o_ref):
    # x_ref: (tm, Kd_p) bf16, w_ref: (Kd_p, tn) bf16, b_ref: (1, tn) f32
    y = jnp.dot(x_ref[...], w_ref[...], preferred_element_type=jnp.float32)
    y = y + b_ref[...]
    o_ref[...] = jnp.maximum(y, 0.0).astype(o_ref.dtype)


def fused_matmul_bias_relu(x_slab, w_mat, bias_row, *, tm, tn, out_dtype):
    """x_slab: (M_p, Kd_p) bf16, w_mat: (Kd_p, Cout_p) bf16, bias: (1, Cout_p) f32."""
    M_p, Kd_p = x_slab.shape
    Cout_p = w_mat.shape[-1]
    assert tm % 8 == 0 and M_p % tm == 0, (tm, M_p)
    assert tn % 128 == 0 and Cout_p % tn == 0, (tn, Cout_p)
    n_m, n_n = M_p // tm, Cout_p // tn
    out_itemsize = jnp.dtype(out_dtype).itemsize

    # Weight / bias blocks are constant across the grid when Cout is untiled:
    # single-buffer them to halve their resident VMEM.
    wb_bufs = 1 if n_n == 1 else None
    w_bufs_resident = 1 if n_n == 1 else 2

    # Per-step VMEM footprint (double-buffered x / out, wb-buffered weights)
    # plus slack for Mosaic internal scratch, clamped to [32 MiB, 48 MiB]:
    # 48 MiB leaves headroom under v7x's 64 MiB physical VMEM per TensorCore;
    # v5e/v6e (128 MiB) are not constrained by this.
    need = (2 * tm * Kd_p * 2
            + w_bufs_resident * Kd_p * tn * 2
            + 2 * tn * 4
            + 2 * tm * tn * out_itemsize)
    vmem_limit = int(min(max(need + (4 << 20), 32 << 20), 48 << 20))

    cost = pl.CostEstimate(
        flops=2 * M_p * Kd_p * Cout_p,
        transcendentals=0,
        bytes_accessed=(M_p * Kd_p * 2 + Kd_p * Cout_p * 2
                        + Cout_p * 4 + M_p * Cout_p * out_itemsize),
    )

    return pl.pallas_call(
        _matmul_bias_relu_kernel,
        out_shape=jax.ShapeDtypeStruct((M_p, Cout_p), out_dtype),
        grid_spec=pltpu.PrefetchScalarGridSpec(
            num_scalar_prefetch=0,
            grid=(n_m, n_n),
            in_specs=[
                pl.BlockSpec((tm, Kd_p), lambda i, j: (i, 0)),
                _block_spec((Kd_p, tn), lambda i, j: (0, j), buffers=wb_bufs),
                _block_spec((1, tn), lambda i, j: (0, j), buffers=wb_bufs),
            ],
            out_specs=pl.BlockSpec((tm, tn), lambda i, j: (i, j)),
        ),
        compiler_params=pltpu.CompilerParams(
            dimension_semantics=("parallel", "parallel"),
            vmem_limit_bytes=vmem_limit,
        ),
        cost_estimate=cost,
    )(x_slab, w_mat, bias_row)


# ----------------------------------------------------------------------------
# Plain-JAX glue: im2col slab, built once in bf16 with the Kd pad folded in
# ----------------------------------------------------------------------------
# TODO(synk): for activation-dominated layers, stop materializing the K^2x
# im2col slab in HBM and instead DMA a halo tile of the padded NHWC input per
# M-tile (memory_space=pl.ANY + make_async_copy), forming the taps in VMEM.
def im2col(x_nhwc, k, stride, pad, kd_p):
    """(N,H,W,C) -> (N*OH*OW, kd_p) tap-major / channel-minor slab."""
    N, H, W, C = x_nhwc.shape
    if pad > 0:
        x_nhwc = jnp.pad(x_nhwc, ((0, 0), (pad, pad), (pad, pad), (0, 0)))
    Hp, Wp = H + 2 * pad, W + 2 * pad
    OH = (Hp - k) // stride + 1
    OW = (Wp - k) // stride + 1
    cols = []
    for kh in range(k):
        for kw in range(k):
            cols.append(x_nhwc[:, kh:kh + stride * (OH - 1) + 1:stride,
                                  kw:kw + stride * (OW - 1) + 1:stride, :])
    kd = k * k * C
    if kd_p > kd:  # fold the contraction-dim zero pad into the same concat
        cols.append(jnp.zeros((N, OH, OW, kd_p - kd), x_nhwc.dtype))
    slab = jnp.concatenate(cols, axis=-1).reshape(N * OH * OW, kd_p)
    return slab, (N, OH, OW)


def _choose_tm(M, tm_target=512):
    tm_target = max(8, _round_up(tm_target, 8))
    tm = min(tm_target, _round_up(M, 8))
    # Keep >= 2 grid steps along the "parallel" M axis so both v7x TensorCores
    # get work; on v5e/v6e the grid is a serial loop and this costs nothing.
    if _round_up(M, tm) // tm < 2 and M > 8:
        tm = _round_up(-(-M // 2), 8)
    return tm


def _choose_tn(Cout_p, tm, Kd_p, out_itemsize, budget=24 << 20):
    def footprint(tn):
        return 2 * tm * Kd_p * 2 + 2 * Kd_p * tn * 2 + 2 * tm * tn * out_itemsize
    if footprint(Cout_p) <= budget:
        return Cout_p            # single Cout tile: weights stay resident
    if Cout_p % 256 == 0 and footprint(256) <= budget:
        return 256
    return 128


def basic_conv2d_forward(x_nchw, w_oihw, bn_scale, bn_bias, *, stride=1, pad=0,
                         tm=512, out_dtype=jnp.bfloat16,
                         compute_dtype=jnp.bfloat16):
    """Conv2d(bias=False) + BatchNorm2d(eval, folded) + ReLU. NCHW in/out."""
    N, Cin, H, W = x_nchw.shape
    Cout, _, kh, kw = w_oihw.shape
    assert kh == kw, "square kernels only"
    k = kh

    # Cast to bf16 BEFORE the glue (transpose / pad / concat / reshape) so
    # every HBM pass over the K^2-times-blown-up slab is half-width.
    x_nhwc = jnp.transpose(x_nchw, (0, 2, 3, 1)).astype(compute_dtype)

    Kd = k * k * Cin
    Kd_p = _round_up(Kd, 16)       # bf16 packed-sublane tile is (16, 128)
    Cout_p = _round_up(Cout, 128)  # lane-dense (unmasked) stores

    slab, (N, OH, OW) = im2col(x_nhwc, k, stride, pad, Kd_p)
    M = N * OH * OW

    tm = _choose_tm(M, tm)
    M_p = _round_up(M, tm)
    if M_p > M:
        slab = jnp.pad(slab, ((0, M_p - M), (0, 0)))

    # (Cout, Cin, Kh, Kw) -> (Kh*Kw*Cin, Cout): tap-major / channel-minor to
    # match the slab; fold the BN scale into the weights (zero pad is inert).
    w_mat = jnp.transpose(w_oihw, (2, 3, 1, 0)).reshape(Kd, Cout)
    w_mat = w_mat * bn_scale[None, :]
    w_mat = jnp.pad(w_mat, ((0, Kd_p - Kd), (0, Cout_p - Cout))).astype(compute_dtype)
    bias_row = jnp.pad(bn_bias, (0, Cout_p - Cout))[None, :].astype(jnp.float32)

    tn = _choose_tn(Cout_p, tm, Kd_p, jnp.dtype(out_dtype).itemsize)

    out = fused_matmul_bias_relu(slab, w_mat, bias_row, tm=tm, tn=tn,
                                 out_dtype=out_dtype)
    out = out[:M, :Cout].reshape(N, OH, OW, Cout)
    # NCHW to match PyTorch; the lane-crossing transpose runs in bf16 (half
    # the bytes).  A consumer that accepts NHWC should take `out` directly.
    return jnp.transpose(out, (0, 3, 1, 2))


# ----------------------------------------------------------------------------
# Parameters (deterministic; eval-mode BN folded to per-channel scale/bias)
# ----------------------------------------------------------------------------
# TODO(synk): BatchNorm2d training-mode batch statistics are not fused;
# eval-mode running stats are folded into scale/bias (standard inference path).
def make_basic_conv_params(key, cin, cout, k, eps=0.001):
    kw_, kg, kb, km, kv = jax.random.split(key, 5)
    w = 0.1 * jax.random.normal(kw_, (cout, cin, k, k), jnp.float32)  # OIHW
    gamma = 1.0 + 0.1 * jax.random.normal(kg, (cout,), jnp.float32)
    beta = 0.1 * jax.random.normal(kb, (cout,), jnp.float32)
    mean = 0.1 * jax.random.normal(km, (cout,), jnp.float32)
    var = jax.random.uniform(kv, (cout,), jnp.float32, minval=0.5, maxval=1.5)
    scale = gamma / jnp.sqrt(var + eps)
    bias = beta - mean * scale
    return w, scale, bias


# ----------------------------------------------------------------------------
# Plain-JAX reference (lax.conv) for a numerical tolerance check
# ----------------------------------------------------------------------------
def reference_basic_conv2d(x_nchw, w_oihw, bn_scale, bn_bias, stride, pad):
    y = jax.lax.conv_general_dilated(
        x_nchw, w_oihw,
        window_strides=(stride, stride),
        padding=[(pad, pad), (pad, pad)],
        dimension_numbers=("NCHW", "OIHW", "NCHW"),
    )
    y = y * bn_scale[None, :, None, None] + bn_bias[None, :, None, None]
    return jnp.maximum(y, 0.0)


if __name__ == "__main__":
    # Small shapes consistent with the module: batch=2, in_channels=4,
    # spatial=16; BasicConv2d(4, 64, kernel_size=3, padding=1).
    N, CIN, H, W = 2, 4, 16, 16
    COUT, K, STRIDE, PAD = 64, 3, 1, 1

    root = jax.random.PRNGKey(0)
    k_x, k_p = jax.random.split(root)
    x = jax.random.normal(k_x, (N, CIN, H, W), jnp.float32)
    w, bn_scale, bn_bias = make_basic_conv_params(k_p, CIN, COUT, K)

    fwd = jax.jit(
        lambda xx: basic_conv2d_forward(
            xx, w, bn_scale, bn_bias, stride=STRIDE, pad=PAD
        )
    )
    out = fwd(x)
    jax.block_until_ready(out)

    ref = reference_basic_conv2d(x, w, bn_scale, bn_bias, STRIDE, PAD)
    out_f32 = out.astype(jnp.float32)
    assert out.shape == ref.shape == (N, COUT, H, W), (out.shape, ref.shape)
    assert bool(jnp.all(jnp.isfinite(out_f32)))
    assert bool(jnp.all(out_f32 >= 0.0))  # ReLU output
    # bf16 MXU operands + bf16 output, f32 accumulation -> modest tolerance
    # vs the f32 reference (intentional inference-precision choice).
    max_err = float(jnp.max(jnp.abs(out_f32 - ref)))
    assert bool(jnp.allclose(out_f32, ref, rtol=5e-2, atol=5e-2)), max_err

    print("KERNEL_OK")
</pallas_src>

<mosaic_0001>
module attributes {stable_mosaic.version = 11 : i64} {
  func.func @_matmul_bias_relu_kernel(%arg0: i32, %arg1: i32, %arg2: memref<256x48xbf16, #tpu.memory_space<vmem>>, %arg3: memref<48x128xbf16, #tpu.memory_space<vmem>>, %arg4: memref<1x128xf32, #tpu.memory_space<vmem>>, %arg5: memref<256x128xbf16, #tpu.memory_space<vmem>>) attributes {dimension_semantics = [#tpu.dimension_semantics<parallel>, #tpu.dimension_semantics<parallel>], iteration_bounds = array<i64: 2, 1>, scalar_prefetch = 0 : i64, scratch_operands = 0 : i64, tpu.core_type = #tpu.core_type<tc>, window_params = [{transform_indices = @transform_0, window_bounds = array<i64: 256, 48>}, {pipeline_mode = #tpu.pipeline_mode<synchronous>, transform_indices = @transform_1, window_bounds = array<i64: 48, 128>}, {pipeline_mode = #tpu.pipeline_mode<synchronous>, transform_indices = @transform_2, window_bounds = array<i64: 1, 128>}, {transform_indices = @transform_3, window_bounds = array<i64: 256, 128>}]} {
    %c0 = arith.constant 0 : index
    %c0_0 = arith.constant 0 : index
    %0 = vector.load %arg2[%c0, %c0_0] : memref<256x48xbf16, #tpu.memory_space<vmem>>, vector<256x48xbf16>
    %c0_1 = arith.constant 0 : index
    %c0_2 = arith.constant 0 : index
    %1 = vector.load %arg3[%c0_1, %c0_2] : memref<48x128xbf16, #tpu.memory_space<vmem>>, vector<48x128xbf16>
    %cst = arith.constant dense<0.000000e+00> : vector<256x128xf32>
    %2 = tpu.matmul %0, %1, %cst {dimension_numbers = #tpu.dot_dimension_numbers<[1], [0], [0], [1], [0, 0, 1, 1], [], []>} : vector<256x48xbf16>, vector<48x128xbf16>, vector<256x128xf32> -> vector<256x128xf32>
    %c0_3 = arith.constant 0 : index
    %c0_4 = arith.constant 0 : index
    %3 = vector.load %arg4[%c0_3, %c0_4] : memref<1x128xf32, #tpu.memory_space<vmem>>, vector<1x128xf32>
    %4 = vector.broadcast %3 : vector<1x128xf32> to vector<256x128xf32>
    %5 = arith.addf %2, %4 : vector<256x128xf32>
    %cst_5 = arith.constant 0.000000e+00 : f32
    %6 = vector.broadcast %cst_5 : f32 to vector<256x128xf32>
    %7 = arith.maximumf %5, %6 : vector<256x128xf32>
    %8 = arith.truncf %7 : vector<256x128xf32> to vector<256x128xbf16>
    %c0_6 = arith.constant 0 : index
    %c0_7 = arith.constant 0 : index
    %9 = vector.load %arg5[%c0_6, %c0_7] : memref<256x128xbf16, #tpu.memory_space<vmem>>, vector<256x128xbf16>
    tpu.vector_store %arg5[%c0_6, %c0_7], %8 {strides = array<i32>} : memref<256x128xbf16, #tpu.memory_space<vmem>>, vector<256x128xbf16>,
    return
  }
  func.func @transform_0(%arg0: i32, %arg1: i32) -> (i32, i32) {
    %c0_i32 = arith.constant 0 : i32
    %c0_i32_0 = arith.constant 0 : i32
    return %arg0, %c0_i32 : i32, i32
  }
  func.func @transform_1(%arg0: i32, %arg1: i32) -> (i32, i32) {
    %c0_i32 = arith.constant 0 : i32
    %c0_i32_0 = arith.constant 0 : i32
    return %c0_i32, %arg1 : i32, i32
  }
  func.func @transform_2(%arg0: i32, %arg1: i32) -> (i32, i32) {
    %c0_i32 = arith.constant 0 : i32
    %c0_i32_0 = arith.constant 0 : i32
    return %c0_i32, %arg1 : i32, i32
  }
  func.func @transform_3(%arg0: i32, %arg1: i32) -> (i32, i32) {
    %c0_i32 = arith.constant 0 : i32
    return %arg0, %arg1 : i32, i32
  }
}

</mosaic_0001>

<llo_original>
// kernel: _lambda_.1
$region0: #{_lambda_.1}
  #allocation0 [shape = 'u32[]', space=smem, size = 0x4, offset = 0x4, fixed_abs, tag = 'smem constant byte address 0x4 - core index']
  #allocation1 [shape = 'u32[144,128]{1,0:T(1,128)}', space=vmem, size = 0x12000, scoped, tag = 'internal scratch']
  %s0 = inlined_call_operand.vmem [shape: bf16[512,48], index: 0, kind: input, shape index: {}]
  %s1 = inlined_call_operand.vmem [shape: bf16[48,128], index: 1, kind: input, shape index: {}]
  %s2 = inlined_call_operand.vmem [shape: f32[1,128], index: 2, kind: input, shape index: {}]
  %s3 = inlined_call_operand.hbm [shape: bf16[512,128], index: 3, kind: output, shape index: {}]
  %s4 = sld [smem:[#allocation0]]
  $region45: #{_lambda_.1} parent=0
    _
  %s6 = ssub.s32 1, %s4
  %s7 = scalar_select 0, %s6, %s4
  $region1: #{_lambda_.1} parent=0
    #allocation2 [shape = 'u8[131072]{0}', space=vmem, size = 0x20000, scoped, tag = 'output window, operand 0']
    #allocation3 [shape = 's32[2]{0}', space=sflag, size = 0x8, scoped, tag = 'scoped memory for _lambda_.1']
    %8 = vsyncpa [#allocation3], 0
    %s9 = scalar_lea.sflag [#allocation3], 1
    %10 = vsyncpa %s9, 0
    loop: start=0, step=1, limit=4
    $region2: #{_lambda_.1} parent=1 // loop_pre_header
      _
    $region3: #{_lambda_.1} parent=1 // loop_header
      %s12 = sphi 0, %s16
      %p13 = scmp.ge.s32.totalorder %s12, 4
      %s19 = sphi 0, %s31
      %s20 = sphi 0, %s27
      %s21 = sphi 0, %s19
      %s22 = sphi 0, %s20
      %s23 = sphi 0, %s21
      %s24 = sphi 0, %s22
      %s34 = sphi 0, %s36
      %s37 = sphi 0, %s34
      %s38 = sphi 0, %s37
      %s54 = sphi 0, %s38
      %s60 = sphi 0, %s62
      %s63 = sphi 0, %s60
      %s64 = sphi 0, %s63
      %s80 = sphi 0, %s64
      %s86 = sphi 0, %s88
      %s89 = sphi 0, %s86
      %s90 = sphi 0, %s89
      %s106 = sphi 0, %s90
      %s114 = sphi 0, %s116
      %s117 = sphi 0, %s114
      %s118 = sphi 0, %s117
      %s134 = sphi 0, %s118
    $region4: #{_lambda_.1} parent=1 // loop_header_branch
      %15 = sbr.rel (%p13) target = $region8
    $region5: #{_lambda_.1} parent=1 // loop_body
      %s17 = ssub.s32 %s12, 1
      %s18 = ssub.s32 %s12, 2
      %s25 = sadd.s32 1, %s20
      %p26 = scmp.ge.s32.totalorder %s25, 1
      %s27 = scalar_select %p26, 0, %s25
      %s28 = sadd.s32 1, %s19
      %s29 = scalar_select %p26, %s28, %s19
      %p30 = scmp.ge.s32.totalorder %s29, 2
      %s31 = scalar_select %p30, 0, %s29
      %s32 = ssub.s32 %s19, %s31
      %p33 = scmp.eq.s32.totalorder %s32, 0
      %s35 = sadd.s32 %s34, 1
      %s36 = scalar_select %p33, %s34, %s35
      %p39 = pneg %p33
      %p40 = scmp.eq.s32.totalorder %s12, 1
      %p41 = por %p39, %p40
      %p42 = scmp.ne.s32.totalorder %s34, %s37
      %p43 = scmp.eq.s32.totalorder %s12, 0
      %p44 = por %p42, %p43
      %p45 = scmp.ne.s32.totalorder %s34, %s37
      %p46 = scmp.eq.s32.totalorder %s17, 1
      %p47 = por %p45, %p46
      %p48 = scmp.ne.s32.totalorder %s37, %s38
      %p49 = scmp.eq.s32.totalorder %s17, 0
      %p50 = por %p48, %p49
      %p51 = scmp.ne.s32.totalorder %s37, %s38
      %p52 = scmp.eq.s32.totalorder %s18, 1
      %p53 = por %p51, %p52
      %p55 = scmp.ne.s32.totalorder %s38, %s54
      %p56 = scmp.eq.s32.totalorder %s18, 0
      %p57 = por %p55, %p56
      %s58 = ssub.s32 %s20, %s27
      %p59 = scmp.eq.s32.totalorder %s58, 0
      %s61 = sadd.s32 %s60, 1
      %s62 = scalar_select %p59, %s60, %s61
      %p65 = pneg %p59
      %p66 = scmp.eq.s32.totalorder %s12, 1
      %p67 = por %p65, %p66
      %p68 = scmp.ne.s32.totalorder %s60, %s63
      %p69 = scmp.eq.s32.totalorder %s12, 0
      %p70 = por %p68, %p69
      %p71 = scmp.ne.s32.totalorder %s60, %s63
      %p72 = scmp.eq.s32.totalorder %s17, 1
      %p73 = por %p71, %p72
      %p74 = scmp.ne.s32.totalorder %s63, %s64
      %p75 = scmp.eq.s32.totalorder %s17, 0
      %p76 = por %p74, %p75
      %p77 = scmp.ne.s32.totalorder %s63, %s64
      %p78 = scmp.eq.s32.totalorder %s18, 1
      %p79 = por %p77, %p78
      %p81 = scmp.ne.s32.totalorder %s64, %s80
      %p82 = scmp.eq.s32.totalorder %s18, 0
      %p83 = por %p81, %p82
      %s84 = ssub.s32 %s20, %s27
      %p85 = scmp.eq.s32.totalorder %s84, 0
      %s87 = sadd.s32 %s86, 1
      %s88 = scalar_select %p85, %s86, %s87
      %p91 = pneg %p85
      %p92 = scmp.eq.s32.totalorder %s12, 1
      %p93 = por %p91, %p92
      %p94 = scmp.ne.s32.totalorder %s86, %s89
      %p95 = scmp.eq.s32.totalorder %s12, 0
      %p96 = por %p94, %p95
      %p97 = scmp.ne.s32.totalorder %s86, %s89
      %p98 = scmp.eq.s32.totalorder %s17, 1
      %p99 = por %p97, %p98
      %p100 = scmp.ne.s32.totalorder %s89, %s90
      %p101 = scmp.eq.s32.totalorder %s17, 0
      %p102 = por %p100, %p101
      %p103 = scmp.ne.s32.totalorder %s89, %s90
      %p104 = scmp.eq.s32.totalorder %s18, 1
      %p105 = por %p103, %p104
      %p107 = scmp.ne.s32.totalorder %s90, %s106
      %p108 = scmp.eq.s32.totalorder %s18, 0
      %p109 = por %p107, %p108
      %s110 = ssub.s32 %s19, %s31
      %s111 = ssub.s32 %s20, %s27
      %s112 = sor.u32 %s110, %s111
      %p113 = scmp.eq.s32.totalorder %s112, 0
      %s115 = sadd.s32 %s114, 1
      %s116 = scalar_select %p113, %s114, %s115
      %p119 = pneg %p113
      %p120 = scmp.eq.s32.totalorder %s12, 1
      %p121 = por %p119, %p120
      %p122 = scmp.ne.s32.totalorder %s114, %s117
      %p123 = scmp.eq.s32.totalorder %s12, 0
      %p124 = por %p122, %p123
      %p125 = scmp.ne.s32.totalorder %s114, %s117
      %p126 = scmp.eq.s32.totalorder %s17, 1
      %p127 = por %p125, %p126
      %p128 = scmp.ne.s32.totalorder %s117, %s118
      %p129 = scmp.eq.s32.totalorder %s17, 0
      %p130 = por %p128, %p129
      %p131 = scmp.ne.s32.totalorder %s117, %s118
      %p132 = scmp.eq.s32.totalorder %s18, 1
      %p133 = por %p131, %p132
      %p135 = scmp.ne.s32.totalorder %s118, %s134
      %p136 = scmp.eq.s32.totalorder %s18, 0
      %p137 = por %p135, %p136
      %p138 = scmp.le.s32.totalorder 1, %s12
      %p139 = scmp.lt.s32.totalorder %s12, 3
      %p140 = pnand %p138, %p139
      %p141 = pneg %p140
      // Predicated region
      $region9: #{_lambda_.1} parent=5 // pred_check
        _
      $region10: #{_lambda_.1} parent=5 // pred_check_branch
        %143 = sbr.rel (%p140) target = $region12
      $region11: #{_lambda_.1} parent=5 // pred_region
        %s144 = ssub.s32 %s12, 1
        // Predicated region
        $region13: #{_lambda_.1} parent=11 // pred_check
          %p145 = pneg %p76
        $region14: #{_lambda_.1} parent=11 // pred_check_branch
          %147 = sbr.rel (%p145) target = $region16
        $region15: #{_lambda_.1} parent=11 // pred_region
          %p148 = scmp.lt.s32.totalorder %s22, 0
          %s149 = scalar_select %p148, %s22, 0
          %s150 = smul.addr %s149, 4
          %s151 = scalar_lea.vmem %s1, %s150
        $region16: #{_lambda_.1} parent=11 // pred_fallthru
          _
        // Predicated region
        $region17: #{_lambda_.1} parent=11 // pred_check
          %p152 = pneg %p102
        $region18: #{_lambda_.1} parent=11 // pred_check_branch
          %154 = sbr.rel (%p152) target = $region20
        $region19: #{_lambda_.1} parent=11 // pred_region
          %p155 = scmp.lt.s32.totalorder %s22, 0
          %s156 = scalar_select %p155, %s22, 0
          %s157 = scalar_lea.vmem %s2, %s156
        $region20: #{_lambda_.1} parent=11 // pred_fallthru
          _
      $region12: #{_lambda_.1} parent=5 // pred_fallthru
        _
      %p158 = scmp.lt.s32.totalorder %s12, 2
      // Predicated region
      $region21: #{_lambda_.1} parent=5 // pred_check
        %p159 = pneg %p158
      $region22: #{_lambda_.1} parent=5 // pred_check_branch
        %161 = sbr.rel (%p159) target = $region24
      $region23: #{_lambda_.1} parent=5 // pred_region
        // Predicated region
        $region25: #{_lambda_.1} parent=23 // pred_check
          %p162 = pneg %p44
        $region26: #{_lambda_.1} parent=23 // pred_check_branch
          %164 = sbr.rel (%p162) target = $region28
        $region27: #{_lambda_.1} parent=23 // pred_region
          %s165 = smul.u32 32, %s19
          %p166 = scmp.lt.s32.totalorder %s165, 63
          %s167 = scalar_select %p166, %s165, 63
          %s168 = smul.addr %s167, 4
          %s169 = scalar_lea.vmem %s0, %s168
          %s170 = smul.u32 32, %s19
        $region28: #{_lambda_.1} parent=23 // pred_fallthru
          _
      $region24: #{_lambda_.1} parent=5 // pred_fallthru
        _
      %p171 = scmp.le.s32.totalorder 1, %s12
      %p172 = scmp.lt.s32.totalorder %s12, 3
      %p173 = pnand %p171, %p172
      %p174 = pneg %p173
      // Predicated region
      $region29: #{_lambda_.1} parent=5 // pred_check
        _
      $region30: #{_lambda_.1} parent=5 // pred_check_branch
        %176 = sbr.rel (%p173) target = $region32
      $region31: #{_lambda_.1} parent=5 // pred_region
        %s177 = ssub.s32 %s12, 1
        %s178 = smul.u32 32, %s21
        %p179 = scmp.lt.s32.totalorder %s178, 63
        %s180 = scalar_select %p179, %s178, 63
        %s181 = smul.addr %s180, 4
        %s182 = scalar_lea.vmem %s0, %s181
        %p183 = pneg %p50
        %p184 = pneg %p47
        %p185 = scmp.lt.s32.totalorder %s22, 0
        %s186 = scalar_select %p185, %s22, 0
        %s187 = smul.addr %s186, 4
        %s188 = scalar_lea.vmem %s1, %s187
        %p189 = pneg %p76
        %p190 = pneg %p73
        %p191 = scmp.lt.s32.totalorder %s22, 0
        %s192 = scalar_select %p191, %s22, 0
        %s193 = scalar_lea.vmem %s2, %s192
        %p194 = pneg %p102
        %p195 = pneg %p99
        %p196 = pneg %p130
        %p197 = pneg %p127
        %s198 = sand.u32 %s117, 1
        %s199 = scalar_lea.sflag [#allocation3], %s198
        %s200 = sand.u32 %s117, 1
        %s201 = smul.addr %s200, 128
        %s202 = scalar_lea.vmem [#allocation2], %s201
        %s203 = smul.u32 32, %s21
        %p204 = scmp.lt.s32.totalorder %s203, 63
        %s205 = scalar_select %p204, %s203, 63
        %s206 = smul.addr %s205, 4
        %s207 = scalar_lea.vmem %s0, %s206
        %s208 = smul.u32 32, %s21
        %p209 = scmp.lt.s32.totalorder %s22, 0
        %s210 = scalar_select %p209, %s22, 0
        %s211 = smul.addr %s210, 4
        %s212 = scalar_lea.vmem %s1, %s211
        %p213 = scmp.lt.s32.totalorder %s22, 0
        %s214 = scalar_select %p213, %s22, 0
        %s215 = scalar_lea.vmem %s2, %s214
        %s216 = smul.u32 32, %s21
        %v218 = vld [vmem:[%s207] sm:$0xf]
        %v219 = vld [vmem:[%s207 + $0x4] sm:$0xf]
        %v220 = vld [vmem:[%s207 + $0x8] sm:$0xf]
        %v221 = vld [vmem:[%s207 + $0xc] sm:$0xf]
        %v222 = vld [vmem:[%s207 + $0x10] sm:$0xf]
        %v223 = vld [vmem:[%s207 + $0x14] sm:$0xf]
        %v224 = vld [vmem:[%s207 + $0x18] sm:$0xf]
        %v225 = vld [vmem:[%s207 + $0x1c] sm:$0xf]
        %v226 = vld [vmem:[%s207 + $0x20] sm:$0xf]
        %v227 = vld [vmem:[%s207 + $0x24] sm:$0xf]
        %v228 = vld [vmem:[%s207 + $0x28] sm:$0xf]
        %v229 = vld [vmem:[%s207 + $0x2c] sm:$0xf]
        %v230 = vld [vmem:[%s207 + $0x30] sm:$0xf]
        %v231 = vld [vmem:[%s207 + $0x34] sm:$0xf]
        %v232 = vld [vmem:[%s207 + $0x38] sm:$0xf]
        %v233 = vld [vmem:[%s207 + $0x3c] sm:$0xf]
        %v234 = vld [vmem:[%s207 + $0x40] sm:$0xf]
        %v235 = vld [vmem:[%s207 + $0x44] sm:$0xf]
        %v236 = vld [vmem:[%s207 + $0x48] sm:$0xf]
        %v237 = vld [vmem:[%s207 + $0x4c] sm:$0xf]
        %v238 = vld [vmem:[%s207 + $0x50] sm:$0xf]
        %v239 = vld [vmem:[%s207 + $0x54] sm:$0xf]
        %v240 = vld [vmem:[%s207 + $0x58] sm:$0xf]
        %v241 = vld [vmem:[%s207 + $0x5c] sm:$0xf]
        %v242 = vld [vmem:[%s207 + $0x60] sm:$0xf]
        %v243 = vld [vmem:[%s207 + $0x64] sm:$0xf]
        %v244 = vld [vmem:[%s207 + $0x68] sm:$0xf]
        %v245 = vld [vmem:[%s207 + $0x6c] sm:$0xf]
        %v246 = vld [vmem:[%s207 + $0x70] sm:$0xf]
        %v247 = vld [vmem:[%s207 + $0x74] sm:$0xf]
        %v248 = vld [vmem:[%s207 + $0x78] sm:$0xf]
        %v249 = vld [vmem:[%s207 + $0x7c] sm:$0xf]
        %v250 = vld [vmem:[%s212] sm:$0xf]
        %v251 = vld [vmem:[%s212 + $0x4] sm:$0xf]
        %v252 = vld [vmem:[%s212 + $0x8] sm:$0xf]
        %v253 = vld [vmem:[%s212 + $0xc] sm:$0xf]
        %v254 = vld [vmem:[%s212 + $0x10] sm:$0xf]
        %v255 = vld [vmem:[%s212 + $0x14] sm:$0xf]
        %v256 = vld [vmem:[%s215] sm:$0x1]
        %v258 = vlaneseq
        %v259 = vshrl.u32 %v258, 7
        %v260 = vsub.s32 0, %v259
        %v261 = vrot.slane %v256, %v260
        %v295 = vunpack.c.l.b16 %v218
        %v296 = vunpack.c.l.b16 %v219
        %v297 = vunpack.c.l.b16 %v220
        %v298 = vunpack.c.l.b16 %v221
        %v299 = vunpack.c.l.b16 %v222
        %v300 = vunpack.c.l.b16 %v223
        %v301 = vunpack.c.l.b16 %v224
        %v302 = vunpack.c.l.b16 %v225
        %v303 = vunpack.c.l.b16 %v226
        %v304 = vunpack.c.l.b16 %v227
        %v305 = vunpack.c.l.b16 %v228
        %v306 = vunpack.c.l.b16 %v229
        %v307 = vunpack.c.l.b16 %v230
        %v308 = vunpack.c.l.b16 %v231
        %v309 = vunpack.c.l.b16 %v232
        %v310 = vunpack.c.l.b16 %v233
        %v311 = vunpack.c.l.b16 %v234
        %v312 = vunpack.c.l.b16 %v235
        %v313 = vunpack.c.l.b16 %v236
        %v314 = vunpack.c.l.b16 %v237
        %v315 = vunpack.c.l.b16 %v238
        %v316 = vunpack.c.l.b16 %v239
        %v317 = vunpack.c.l.b16 %v240
        %v318 = vunpack.c.l.b16 %v241
        %v319 = vunpack.c.l.b16 %v242
        %v320 = vunpack.c.l.b16 %v243
        %v321 = vunpack.c.l.b16 %v244
        %v322 = vunpack.c.l.b16 %v245
        %v323 = vunpack.c.l.b16 %v246
        %v324 = vunpack.c.l.b16 %v247
        %v325 = vunpack.c.l.b16 %v248
        %v326 = vunpack.c.l.b16 %v249
        %v327 = vpack.c.b16 %v296, %v295
        %v328 = vpack.c.b16 %v298, %v297
        %v329 = vpack.c.b16 %v300, %v299
        %v330 = vpack.c.b16 %v302, %v301
        %v331 = vpack.c.b16 %v304, %v303
        %v332 = vpack.c.b16 %v306, %v305
        %v333 = vpack.c.b16 %v308, %v307
        %v334 = vpack.c.b16 %v310, %v309
        %v335 = vpack.c.b16 %v312, %v311
        %v336 = vpack.c.b16 %v314, %v313
        %v337 = vpack.c.b16 %v316, %v315
        %v338 = vpack.c.b16 %v318, %v317
        %v339 = vpack.c.b16 %v320, %v319
        %v340 = vpack.c.b16 %v322, %v321
        %v341 = vpack.c.b16 %v324, %v323
        %v342 = vpack.c.b16 %v326, %v325
        %v349 = vunpack.c.l.b16 %v250
        %v350 = vunpack.c.l.b16 %v251
        %v351 = vunpack.c.l.b16 %v252
        %v352 = vunpack.c.l.b16 %v253
        %v353 = vunpack.c.l.b16 %v254
        %v354 = vunpack.c.l.b16 %v255
        %v355 = vpack.c.b16 %v350, %v349
        %v356 = vpack.c.b16 %v352, %v351
        %v357 = vpack.c.b16 %v354, %v353
        %vm361 = vcmask 392192
        %v363 = vsel %vm361, %v327, 0
        %v366 = vsel %vm361, %v328, 0
        %v369 = vsel %vm361, %v329, 0
        %v372 = vsel %vm361, %v330, 0
        %v375 = vsel %vm361, %v331, 0
        %v378 = vsel %vm361, %v332, 0
        %v381 = vsel %vm361, %v333, 0
        %v384 = vsel %vm361, %v334, 0
        %v387 = vsel %vm361, %v335, 0
        %v390 = vsel %vm361, %v336, 0
        %v393 = vsel %vm361, %v337, 0
        %v396 = vsel %vm361, %v338, 0
        %v399 = vsel %vm361, %v339, 0
        %v402 = vsel %vm361, %v340, 0
        %v405 = vsel %vm361, %v341, 0
        %v408 = vsel %vm361, %v342, 0
        %410 = vmatprep.subr.bf16.mxu0 0
        %411 = vmatpush1.bf16.msra.mxu0 %v355
        %412 = vmatprep.subr.bf16.mxu0 0
        %413 = vmatpush1.bf16.msra.mxu0 %v356
        %414 = vmatprep.subr.bf16.mxu0 0
        %415 = vmatpush1.bf16.msra.mxu0 %v357
        %416 = vmatprep.subr.bf16.mxu0 0
        %417 = vmatpush1.bf16.msra.mxu0 0
        %418 = vmatprep.subr.bf16.mxu0 0
        %419 = vmatpush1.bf16.msra.mxu0 0
        %420 = vmatprep.subr.bf16.mxu0 0
        %421 = vmatpush1.bf16.msra.mxu0 0
        %422 = vmatprep.subr.bf16.mxu0 0
        %423 = vmatpush1.bf16.msra.mxu0 0
        %424 = vmatprep.subr.bf16.mxu0 0
        %425 = vmatpush1.bf16.msra.mxu0 0
        %426 = vmatprep.subr.bf16.mxu0 0
        %427 = vmatpush1.bf16.msra.mxu0 0
        %428 = vmatprep.subr.bf16.mxu0 0
        %429 = vmatpush1.bf16.msra.mxu0 0
        %430 = vmatprep.subr.bf16.mxu0 0
        %431 = vmatpush1.bf16.msra.mxu0 0
        %432 = vmatprep.subr.bf16.mxu0 0
        %433 = vmatpush1.bf16.msra.mxu0 0
        %434 = vmatprep.subr.bf16.mxu0 0
        %435 = vmatpush1.bf16.msra.mxu0 0
        %436 = vmatprep.subr.bf16.mxu0 0
        %437 = vmatpush1.bf16.msra.mxu0 0
        %438 = vmatprep.subr.bf16.mxu0 0
        %439 = vmatpush1.bf16.msra.mxu0 0
        %440 = vmatprep.subr.bf16.mxu0 0
        %441 = vmatpush1.bf16.msra.mxu0 0
        %442 = vmatprep.mubr.bf16.mxu0 0
        %443 = vmatmul.mubr.bf16.gmra.mrb[0].mxu0 %v363
        %v444 = vpop.f32.mrb[0].mxu0
        %v445 = vadd.f32 %v261, %v444
        %v446 = vpop.f32.mrb[0].mxu0
        %v447 = vpop.f32.mrb[0].mxu0
        %v448 = vadd.f32 %v261, %v447
        %v449 = vpop.f32.mrb[0].mxu0
        %450 = vmatprep.mubr.bf16.mxu0 0
        %451 = vmatmul.mubr.bf16.gmra.mrb[0].mxu0 %v366
        %v452 = vpop.f32.mrb[0].mxu0
        %v453 = vadd.f32 %v261, %v452
        %v454 = vpop.f32.mrb[0].mxu0
        %v455 = vpop.f32.mrb[0].mxu0
        %v456 = vadd.f32 %v261, %v455
        %v457 = vpop.f32.mrb[0].mxu0
        %458 = vmatprep.mubr.bf16.mxu0 0
        %459 = vmatmul.mubr.bf16.gmra.mrb[0].mxu0 %v369
        %v460 = vpop.f32.mrb[0].mxu0
        %v461 = vadd.f32 %v261, %v460
        %v462 = vpop.f32.mrb[0].mxu0
        %v463 = vpop.f32.mrb[0].mxu0
        %v464 = vadd.f32 %v261, %v463
        %v465 = vpop.f32.mrb[0].mxu0
        %466 = vmatprep.mubr.bf16.mxu0 0
        %467 = vmatmul.mubr.bf16.gmra.mrb[0].mxu0 %v372
        %v468 = vpop.f32.mrb[0].mxu0
        %v469 = vadd.f32 %v261, %v468
        %v470 = vpop.f32.mrb[0].mxu0
        %v471 = vpop.f32.mrb[0].mxu0
        %v472 = vadd.f32 %v261, %v471
        %v473 = vpop.f32.mrb[0].mxu0
        %474 = vmatprep.mubr.bf16.mxu0 0
        %475 = vmatmul.mubr.bf16.gmra.mrb[0].mxu0 %v375
        %v476 = vpop.f32.mrb[0].mxu0
        %v477 = vadd.f32 %v261, %v476
        %v478 = vpop.f32.mrb[0].mxu0
        %v479 = vpop.f32.mrb[0].mxu0
        %v480 = vadd.f32 %v261, %v479
        %v481 = vpop.f32.mrb[0].mxu0
        %482 = vmatprep.mubr.bf16.mxu0 0
        %483 = vmatmul.mubr.bf16.gmra.mrb[0].mxu0 %v378
        %v484 = vpop.f32.mrb[0].mxu0
        %v485 = vadd.f32 %v261, %v484
        %v486 = vpop.f32.mrb[0].mxu0
        %v487 = vpop.f32.mrb[0].mxu0
        %v488 = vadd.f32 %v261, %v487
        %v489 = vpop.f32.mrb[0].mxu0
        %490 = vmatprep.mubr.bf16.mxu0 0
        %491 = vmatmul.mubr.bf16.gmra.mrb[0].mxu0 %v381
        %v492 = vpop.f32.mrb[0].mxu0
        %v493 = vadd.f32 %v261, %v492
        %v494 = vpop.f32.mrb[0].mxu0
        %v495 = vpop.f32.mrb[0].mxu0
        %v496 = vadd.f32 %v261, %v495
        %v497 = vpop.f32.mrb[0].mxu0
        %498 = vmatprep.mubr.bf16.mxu0 0
        %499 = vmatmul.mubr.bf16.gmra.mrb[0].mxu0 %v384
        %v500 = vpop.f32.mrb[0].mxu0
        %v501 = vadd.f32 %v261, %v500
        %v502 = vpop.f32.mrb[0].mxu0
        %v503 = vpop.f32.mrb[0].mxu0
        %v504 = vadd.f32 %v261, %v503
        %v505 = vpop.f32.mrb[0].mxu0
        %506 = vmatprep.mubr.bf16.mxu0 0
        %507 = vmatmul.mubr.bf16.gmra.mrb[0].mxu0 %v387
        %v508 = vpop.f32.mrb[0].mxu0
        %v509 = vadd.f32 %v261, %v508
        %v510 = vpop.f32.mrb[0].mxu0
        %v511 = vpop.f32.mrb[0].mxu0
        %v512 = vadd.f32 %v261, %v511
        %v513 = vpop.f32.mrb[0].mxu0
        %514 = vmatprep.mubr.bf16.mxu0 0
        %515 = vmatmul.mubr.bf16.gmra.mrb[0].mxu0 %v390
        %v516 = vpop.f32.mrb[0].mxu0
        %v517 = vadd.f32 %v261, %v516
        %v518 = vpop.f32.mrb[0].mxu0
        %v519 = vpop.f32.mrb[0].mxu0
        %v520 = vadd.f32 %v261, %v519
        %v521 = vpop.f32.mrb[0].mxu0
        %522 = vmatprep.mubr.bf16.mxu0 0
        %523 = vmatmul.mubr.bf16.gmra.mrb[0].mxu0 %v393
        %v524 = vpop.f32.mrb[0].mxu0
        %v525 = vadd.f32 %v261, %v524
        %v526 = vpop.f32.mrb[0].mxu0
        %v527 = vpop.f32.mrb[0].mxu0
        %v528 = vadd.f32 %v261, %v527
        %v529 = vpop.f32.mrb[0].mxu0
        %530 = vmatprep.mubr.bf16.mxu0 0
        %531 = vmatmul.mubr.bf16.gmra.mrb[0].mxu0 %v396
        %v532 = vpop.f32.mrb[0].mxu0
        %v533 = vadd.f32 %v261, %v532
        %v534 = vpop.f32.mrb[0].mxu0
        %v535 = vpop.f32.mrb[0].mxu0
        %v536 = vadd.f32 %v261, %v535
        %v537 = vpop.f32.mrb[0].mxu0
        %538 = vmatprep.mubr.bf16.mxu0 0
        %539 = vmatmul.mubr.bf16.gmra.mrb[0].mxu0 %v399
        %v540 = vpop.f32.mrb[0].mxu0
        %v541 = vadd.f32 %v261, %v540
        %v542 = vpop.f32.mrb[0].mxu0
        %v543 = vpop.f32.mrb[0].mxu0
        %v544 = vadd.f32 %v261, %v543
        %v545 = vpop.f32.mrb[0].mxu0
        %546 = vmatprep.mubr.bf16.mxu0 0
        %547 = vmatmul.mubr.bf16.gmra.mrb[0].mxu0 %v402
        %v548 = vpop.f32.mrb[0].mxu0
        %v549 = vadd.f32 %v261, %v548
        %v550 = vpop.f32.mrb[0].mxu0
        %v551 = vpop.f32.mrb[0].mxu0
        %v552 = vadd.f32 %v261, %v551
        %v553 = vpop.f32.mrb[0].mxu0
        %554 = vmatprep.mubr.bf16.mxu0 0
        %555 = vmatmul.mubr.bf16.gmra.mrb[0].mxu0 %v405
        %v556 = vpop.f32.mrb[0].mxu0
        %v557 = vadd.f32 %v261, %v556
        %v558 = vpop.f32.mrb[0].mxu0
        %v559 = vpop.f32.mrb[0].mxu0
        %v560 = vadd.f32 %v261, %v559
        %v561 = vpop.f32.mrb[0].mxu0
        %562 = vmatprep.mubr.bf16.mxu0 0
        %563 = vmatmul.mubr.bf16.gmra.mrb[0].mxu0 %v408
        %v564 = vpop.f32.mrb[0].mxu0
        %v565 = vadd.f32 %v261, %v564
        %v566 = vpop.f32.mrb[0].mxu0
        %v567 = vpop.f32.mrb[0].mxu0
        %v568 = vadd.f32 %v261, %v567
        %v569 = vpop.f32.mrb[0].mxu0
        %570 = vdwg.mxu0
        %v571 = vmax.f32 %v445, 0.0
        %v572 = vmax.f32 %v448, 0.0
        %v573 = vmax.f32 %v453, 0.0
        %v574 = vmax.f32 %v456, 0.0
        %v575 = vmax.f32 %v461, 0.0
        %v576 = vmax.f32 %v464, 0.0
        %v577 = vmax.f32 %v469, 0.0
        %v578 = vmax.f32 %v472, 0.0
        %v579 = vmax.f32 %v477, 0.0
        %v580 = vmax.f32 %v480, 0.0
        %v581 = vmax.f32 %v485, 0.0
        %v582 = vmax.f32 %v488, 0.0
        %v583 = vmax.f32 %v493, 0.0
        %v584 = vmax.f32 %v496, 0.0
        %v585 = vmax.f32 %v501, 0.0
        %v586 = vmax.f32 %v504, 0.0
        %v587 = vmax.f32 %v509, 0.0
        %v588 = vmax.f32 %v512, 0.0
        %v589 = vmax.f32 %v517, 0.0
        %v590 = vmax.f32 %v520, 0.0
        %v591 = vmax.f32 %v525, 0.0
        %v592 = vmax.f32 %v528, 0.0
        %v593 = vmax.f32 %v533, 0.0
        %v594 = vmax.f32 %v536, 0.0
        %v595 = vmax.f32 %v541, 0.0
        %v596 = vmax.f32 %v544, 0.0
        %v597 = vmax.f32 %v549, 0.0
        %v598 = vmax.f32 %v552, 0.0
        %v599 = vmax.f32 %v557, 0.0
        %v600 = vmax.f32 %v560, 0.0
        %v601 = vmax.f32 %v565, 0.0
        %v602 = vmax.f32 %v568, 0.0
        %v603 = vpack.c.bf16 %v572, %v571
        %v604 = vpack.c.bf16 %v574, %v573
        %v605 = vpack.c.bf16 %v576, %v575
        %v606 = vpack.c.bf16 %v578, %v577
        %v607 = vpack.c.bf16 %v580, %v579
        %v608 = vpack.c.bf16 %v582, %v581
        %v609 = vpack.c.bf16 %v584, %v583
        %v610 = vpack.c.bf16 %v586, %v585
        %v611 = vpack.c.bf16 %v588, %v587
        %v612 = vpack.c.bf16 %v590, %v589
        %v613 = vpack.c.bf16 %v592, %v591
        %v614 = vpack.c.bf16 %v594, %v593
        %v615 = vpack.c.bf16 %v596, %v595
        %v616 = vpack.c.bf16 %v598, %v597
        %v617 = vpack.c.bf16 %v600, %v599
        %v618 = vpack.c.bf16 %v602, %v601
        %v635 = vunpack.c.l.b16 %v603
        %v636 = vunpack.c.h.b16 %v603
        %v637 = vunpack.c.l.b16 %v604
        %v638 = vunpack.c.h.b16 %v604
        %v639 = vunpack.c.l.b16 %v605
        %v640 = vunpack.c.h.b16 %v605
        %v641 = vunpack.c.l.b16 %v606
        %v642 = vunpack.c.h.b16 %v606
        %v643 = vunpack.c.l.b16 %v607
        %v644 = vunpack.c.h.b16 %v607
        %v645 = vunpack.c.l.b16 %v608
        %v646 = vunpack.c.h.b16 %v608
        %v647 = vunpack.c.l.b16 %v609
        %v648 = vunpack.c.h.b16 %v609
        %v649 = vunpack.c.l.b16 %v610
        %v650 = vunpack.c.h.b16 %v610
        %v651 = vunpack.c.l.b16 %v611
        %v652 = vunpack.c.h.b16 %v611
        %v653 = vunpack.c.l.b16 %v612
        %v654 = vunpack.c.h.b16 %v612
        %v655 = vunpack.c.l.b16 %v613
        %v656 = vunpack.c.h.b16 %v613
        %v657 = vunpack.c.l.b16 %v614
        %v658 = vunpack.c.h.b16 %v614
        %v659 = vunpack.c.l.b16 %v615
        %v660 = vunpack.c.h.b16 %v615
        %v661 = vunpack.c.l.b16 %v616
        %v662 = vunpack.c.h.b16 %v616
        %v663 = vunpack.c.l.b16 %v617
        %v664 = vunpack.c.h.b16 %v617
        %v665 = vunpack.c.l.b16 %v618
        %v666 = vunpack.c.h.b16 %v618
        %v667 = vpack.c.b16 %v635, %v635
        %v668 = vpack.c.b16 %v636, %v636
        %v669 = vpack.c.b16 %v637, %v637
        %v670 = vpack.c.b16 %v638, %v638
        %v671 = vpack.c.b16 %v639, %v639
        %v672 = vpack.c.b16 %v640, %v640
        %v673 = vpack.c.b16 %v641, %v641
        %v674 = vpack.c.b16 %v642, %v642
        %v675 = vpack.c.b16 %v643, %v643
        %v676 = vpack.c.b16 %v644, %v644
        %v677 = vpack.c.b16 %v645, %v645
        %v678 = vpack.c.b16 %v646, %v646
        %v679 = vpack.c.b16 %v647, %v647
        %v680 = vpack.c.b16 %v648, %v648
        %v681 = vpack.c.b16 %v649, %v649
        %v682 = vpack.c.b16 %v650, %v650
        %v683 = vpack.c.b16 %v651, %v651
        %v684 = vpack.c.b16 %v652, %v652
        %v685 = vpack.c.b16 %v653, %v653
        %v686 = vpack.c.b16 %v654, %v654
        %v687 = vpack.c.b16 %v655, %v655
        %v688 = vpack.c.b16 %v656, %v656
        %v689 = vpack.c.b16 %v657, %v657
        %v690 = vpack.c.b16 %v658, %v658
        %v691 = vpack.c.b16 %v659, %v659
        %v692 = vpack.c.b16 %v660, %v660
        %v693 = vpack.c.b16 %v661, %v661
        %v694 = vpack.c.b16 %v662, %v662
        %v695 = vpack.c.b16 %v663, %v663
        %v696 = vpack.c.b16 %v664, %v664
        %v697 = vpack.c.b16 %v665, %v665
        %v698 = vpack.c.b16 %v666, %v666
        %731 = vst [vmem:[%s202] sm:$0xf] %v667
        %732 = vst [vmem:[%s202 + $0x4] sm:$0xf] %v668
        %733 = vst [vmem:[%s202 + $0x8] sm:$0xf] %v669
        %734 = vst [vmem:[%s202 + $0xc] sm:$0xf] %v670
        %735 = vst [vmem:[%s202 + $0x10] sm:$0xf] %v671
        %736 = vst [vmem:[%s202 + $0x14] sm:$0xf] %v672
        %737 = vst [vmem:[%s202 + $0x18] sm:$0xf] %v673
        %738 = vst [vmem:[%s202 + $0x1c] sm:$0xf] %v674
        %739 = vst [vmem:[%s202 + $0x20] sm:$0xf] %v675
        %740 = vst [vmem:[%s202 + $0x24] sm:$0xf] %v676
        %741 = vst [vmem:[%s202 + $0x28] sm:$0xf] %v677
        %742 = vst [vmem:[%s202 + $0x2c] sm:$0xf] %v678
        %743 = vst [vmem:[%s202 + $0x30] sm:$0xf] %v679
        %744 = vst [vmem:[%s202 + $0x34] sm:$0xf] %v680
        %745 = vst [vmem:[%s202 + $0x38] sm:$0xf] %v681
        %746 = vst [vmem:[%s202 + $0x3c] sm:$0xf] %v682
        %747 = vst [vmem:[%s202 + $0x40] sm:$0xf] %v683
        %748 = vst [vmem:[%s202 + $0x44] sm:$0xf] %v684
        %749 = vst [vmem:[%s202 + $0x48] sm:$0xf] %v685
        %750 = vst [vmem:[%s202 + $0x4c] sm:$0xf] %v686
        %751 = vst [vmem:[%s202 + $0x50] sm:$0xf] %v687
        %752 = vst [vmem:[%s202 + $0x54] sm:$0xf] %v688
        %753 = vst [vmem:[%s202 + $0x58] sm:$0xf] %v689
        %754 = vst [vmem:[%s202 + $0x5c] sm:$0xf] %v690
        %755 = vst [vmem:[%s202 + $0x60] sm:$0xf] %v691
        %756 = vst [vmem:[%s202 + $0x64] sm:$0xf] %v692
        %757 = vst [vmem:[%s202 + $0x68] sm:$0xf] %v693
        %758 = vst [vmem:[%s202 + $0x6c] sm:$0xf] %v694
        %759 = vst [vmem:[%s202 + $0x70] sm:$0xf] %v695
        %760 = vst [vmem:[%s202 + $0x74] sm:$0xf] %v696
        %761 = vst [vmem:[%s202 + $0x78] sm:$0xf] %v697
        %762 = vst [vmem:[%s202 + $0x7c] sm:$0xf] %v698
        %s763 = sand.u32 %s117, 1
        %s764 = scalar_lea.sflag [#allocation3], %s763
        %s765 = sand.u32 %s117, 1
        %s766 = smul.addr %s765, 128
        %s767 = scalar_lea.vmem [#allocation2], %s766
        // Predicated region
        $region33: #{_lambda_.1} parent=31 // pred_check
          %p768 = pneg %p127
        $region34: #{_lambda_.1} parent=31 // pred_check_branch
          %770 = sbr.rel (%p768) target = $region36
        $region35: #{_lambda_.1} parent=31 // pred_region
          %s771 = smul.u32 32, %s21
          %s773 = ssub.s32 2048, 2048
          %774 = vsyncadd %s764, %s773
          %s775 = sadd.s32 %s22, %s771
          %s776 = smul.addr %s775, 64
          %s777 = scalar_lea.hbm %s3, %s776
          %s778 = sshll.u32 %s767, 4
          %s779 = int_to_ptr.vmem [resolvable:$true] %s778
          %784 = dma.vmem_to_hbm [thread:$0]  %s779, 2048, %s777, %s764, 64, 64, 4
        $region36: #{_lambda_.1} parent=31 // pred_fallthru
          _
      $region32: #{_lambda_.1} parent=5 // pred_fallthru
        _
      %p785 = scmp.le.s32.totalorder 2, %s12
      // Predicated region
      $region37: #{_lambda_.1} parent=5 // pred_check
        %p786 = pneg %p785
      $region38: #{_lambda_.1} parent=5 // pred_check_branch
        %788 = sbr.rel (%p786) target = $region40
      $region39: #{_lambda_.1} parent=5 // pred_region
        %s789 = ssub.s32 %s12, 2
        // Predicated region
        $region41: #{_lambda_.1} parent=39 // pred_check
          %p790 = pneg %p133
        $region42: #{_lambda_.1} parent=39 // pred_check_branch
          %792 = sbr.rel (%p790) target = $region44
        $region43: #{_lambda_.1} parent=39 // pred_region
          %s793 = sand.u32 %s118, 1
          %s794 = scalar_lea.sflag [#allocation3], %s793
          %s795 = sand.u32 %s118, 1
          %s796 = smul.addr %s795, 128
          %s797 = scalar_lea.vmem [#allocation2], %s796
          %798 = dma.done %s794, 2048
        $region44: #{_lambda_.1} parent=39 // pred_fallthru
          _
      $region40: #{_lambda_.1} parent=5 // pred_fallthru
        _
    $region6: #{_lambda_.1} parent=1 // loop_footer
      %s16 = sadd.s32 1, %s12
    $region7: #{_lambda_.1} parent=1 // loop_footer_branch
      %11 = sbr.rel target = $region3
    $region8: #{_lambda_.1} parent=1 // loop_exit
      _
    %799 = vsyncpa [#allocation3], 1
    %s800 = scalar_lea.sflag [#allocation3], 1
    %801 = vsyncpa %s800, 1

</llo_original>
